<compile_context>
chip_gen: v7x
topology: tpu7x:2x2x1
jax: 0.10.0
libtpu: 0.0.40
codegen_flags: <defaults>
</compile_context>

<pallas_src>
import jax
import jax.numpy as jnp
from jax.experimental import pallas as pl
from jax.experimental.pallas import tpu as pltpu


def attention_kernel(hid_ref, enc_ref, wh_ref, we_ref, b_ref, v_ref, mask_ref,
                     ctx_ref, attn_ref):
    # hid_ref : (B, H)        enc_ref : (B*S, H)
    # wh_ref  : (H, H)        we_ref  : (H, H)     (pre-transposed W_attn halves)
    # b_ref   : (1, H)        v_ref   : (1, H)
    # mask_ref: (B, S)        ctx_ref : (B, H)     attn_ref: (B, S)
    B, S = attn_ref.shape
    H = hid_ref.shape[-1]

    hid = hid_ref[...]                         # (B, H)
    enc = enc_ref[...]                         # (B*S, H)

    # Two MXU matmuls over the whole batch (== cat([hidden, enc]) @ W_attn.T).
    h_proj = jnp.dot(hid, wh_ref[...], preferred_element_type=jnp.float32)   # (B, H)
    e_proj = jnp.dot(enc, we_ref[...], preferred_element_type=jnp.float32)   # (B*S, H)

    # energy = tanh([hidden, enc] @ W.T + b), h_proj broadcast across S.
    e3 = e_proj.reshape(B, S, H)
    energy = jnp.tanh(e3 + h_proj[:, None, :] + b_ref[...])                  # (B, S, H)

    # scores = energy @ v.T  ->  lane-dense (B, S)
    scores = jnp.sum(energy * v_ref[...], axis=-1)                           # (B, S)

    # softmax over the sequence (lane) axis; EUP reciprocal for the denominator.
    s_max = jnp.max(scores, axis=-1, keepdims=True)                          # (B, 1)
    p = jnp.exp(scores - s_max)                                              # (B, S)
    denom = jnp.sum(p, axis=-1, keepdims=True)                               # (B, 1)
    w = p * pl.reciprocal(denom, approx=True)                                # (B, S)

    # NOTE: PyTorch applies masked_fill(-1e10) AFTER softmax, and the context
    # is computed from those filled values.  Reproduced faithfully.
    attn_w = jnp.where(mask_ref[...] == 0, jnp.float32(-1e10), w)            # (B, S)
    attn_ref[...] = attn_w

    # context = bmm(attn (B,1,S), enc (B,S,H)) on the MXU.
    enc3 = enc.reshape(B, S, H)
    ctx = jnp.einsum('bqs,bsh->bqh', attn_w[:, None, :], enc3,
                     preferred_element_type=jnp.float32)                     # (B, 1, H)
    ctx_ref[...] = ctx[:, 0, :]


def attention_forward(hidden, encoder_outputs, params, mask=None):
    """hidden: (1,B,H), encoder_outputs: (B,S,H), mask: (B,S) or None."""
    W_attn, b_attn, W_v = params                 # (H, 2H), (H,), (1, H)
    B, S, H = encoder_outputs.shape

    hid2 = jnp.transpose(hidden, (1, 0, 2)).reshape(B, H).astype(jnp.float32)   # (B, H)
    enc_flat = encoder_outputs.reshape(B * S, H).astype(jnp.float32)            # (B*S, H)
    WhT = W_attn[:, :H].T.astype(jnp.float32)                                   # (H, H)
    WeT = W_attn[:, H:].T.astype(jnp.float32)                                   # (H, H)
    b2 = b_attn.reshape(1, H).astype(jnp.float32)
    v2 = W_v.reshape(1, H).astype(jnp.float32)
    if mask is None:
        mask_arr = jnp.ones((B, S), jnp.float32)
    else:
        mask_arr = mask.reshape(B, S).astype(jnp.float32)

    vmem = pl.BlockSpec(memory_space=pltpu.MemorySpace.VMEM)
    ctx, attn = pl.pallas_call(
        attention_kernel,
        out_shape=(jax.ShapeDtypeStruct((B, H), jnp.float32),
                   jax.ShapeDtypeStruct((B, S), jnp.float32)),
        in_specs=[vmem] * 7,
        out_specs=(vmem, vmem),
    )(hid2, enc_flat, WhT, WeT, b2, v2, mask_arr)

    return ctx[:, None, :], attn                 # (B, 1, H), (B, S)


def attention_reference(hidden, encoder_outputs, params, mask=None):
    """Pure-JAX mirror of the PyTorch forward, for verification."""
    W_attn, b_attn, W_v = params
    B, S, H = encoder_outputs.shape
    hid = jnp.broadcast_to(jnp.transpose(hidden, (1, 0, 2)), (B, S, H))
    cat = jnp.concatenate([hid, encoder_outputs], axis=2)
    energy = jnp.tanh(cat @ W_attn.T + b_attn)
    scores = (energy @ W_v.T)[..., 0]
    attn = jax.nn.softmax(scores, axis=1)
    if mask is not None:
        attn = jnp.where(mask == 0, -1e10, attn)
    ctx = jnp.einsum('bs,bsh->bh', attn, encoder_outputs)[:, None, :]
    return ctx, attn


def init_params(key, hidden_dim):
    """Deterministic synthetic parameters (PyTorch Linear shapes)."""
    k1, k2, k3 = jax.random.split(key, 3)
    bound = 1.0 / jnp.sqrt(2.0 * hidden_dim)
    W_attn = jax.random.uniform(k1, (hidden_dim, 2 * hidden_dim),
                                jnp.float32, -bound, bound)
    b_attn = jax.random.uniform(k2, (hidden_dim,), jnp.float32, -bound, bound)
    bound_v = 1.0 / jnp.sqrt(float(hidden_dim))
    W_v = jax.random.uniform(k3, (1, hidden_dim), jnp.float32, -bound_v, bound_v)
    return W_attn, b_attn, W_v


if __name__ == "__main__":
    B, S, H = 2, 8, 32
    key = jax.random.PRNGKey(0)
    kp, kh, ke, km = jax.random.split(key, 4)

    params = init_params(kp, H)
    hidden = jax.random.normal(kh, (1, B, H), jnp.float32)
    encoder_outputs = jax.random.normal(ke, (B, S, H), jnp.float32)
    mask = (jax.random.uniform(km, (B, S)) > 0.3).astype(jnp.int32)

    # case 1: no mask   (tolerances account for the approx EUP reciprocal)
    ctx, attn = attention_forward(hidden, encoder_outputs, params, mask=None)
    jax.block_until_ready((ctx, attn))
    ctx_r, attn_r = attention_reference(hidden, encoder_outputs, params, mask=None)
    assert ctx.shape == (B, 1, H) and attn.shape == (B, S)
    assert jnp.allclose(attn, attn_r, atol=2e-3, rtol=2e-3)
    assert jnp.allclose(ctx, ctx_r, atol=2e-3, rtol=2e-3)

    # case 2: with mask (masked_fill applied after softmax, as in the module)
    ctx_m, attn_m = attention_forward(hidden, encoder_outputs, params, mask=mask)
    jax.block_until_ready((ctx_m, attn_m))
    ctx_mr, attn_mr = attention_reference(hidden, encoder_outputs, params, mask=mask)
    assert jnp.allclose(attn_m, attn_mr, atol=2e-3, rtol=2e-3)
    # masked context contains ~1e10-magnitude terms -> compare on a normalized scale
    scale = jnp.maximum(jnp.max(jnp.abs(ctx_mr)), 1.0)
    assert jnp.allclose(ctx_m / scale, ctx_mr / scale, atol=2e-3)

    print("KERNEL_OK")
</pallas_src>

<mosaic_0001>
module attributes {stable_mosaic.version = 11 : i64} {
  func.func @attention_kernel(%arg0: memref<2x32xf32, #tpu.memory_space<vmem>>, %arg1: memref<16x32xf32, #tpu.memory_space<vmem>>, %arg2: memref<32x32xf32, #tpu.memory_space<vmem>>, %arg3: memref<32x32xf32, #tpu.memory_space<vmem>>, %arg4: memref<1x32xf32, #tpu.memory_space<vmem>>, %arg5: memref<1x32xf32, #tpu.memory_space<vmem>>, %arg6: memref<2x8xf32, #tpu.memory_space<vmem>>, %arg7: memref<2x32xf32, #tpu.memory_space<vmem>>, %arg8: memref<2x8xf32, #tpu.memory_space<vmem>>) attributes {dimension_semantics = [], scalar_prefetch = 0 : i64, scratch_operands = 0 : i64, tpu.core_type = #tpu.core_type<tc>} {
    %c0 = arith.constant 0 : index
    %c0_0 = arith.constant 0 : index
    %0 = vector.load %arg0[%c0, %c0_0] : memref<2x32xf32, #tpu.memory_space<vmem>>, vector<2x32xf32>
    %c0_1 = arith.constant 0 : index
    %c0_2 = arith.constant 0 : index
    %1 = vector.load %arg1[%c0_1, %c0_2] : memref<16x32xf32, #tpu.memory_space<vmem>>, vector<16x32xf32>
    %c0_3 = arith.constant 0 : index
    %c0_4 = arith.constant 0 : index
    %2 = vector.load %arg2[%c0_3, %c0_4] : memref<32x32xf32, #tpu.memory_space<vmem>>, vector<32x32xf32>
    %cst = arith.constant dense<0.000000e+00> : vector<2x32xf32>
    %3 = tpu.matmul %0, %2, %cst {dimension_numbers = #tpu.dot_dimension_numbers<[1], [0], [0], [1], [0, 0, 1, 1], [], []>} : vector<2x32xf32>, vector<32x32xf32>, vector<2x32xf32> -> vector<2x32xf32>
    %c0_5 = arith.constant 0 : index
    %c0_6 = arith.constant 0 : index
    %4 = vector.load %arg3[%c0_5, %c0_6] : memref<32x32xf32, #tpu.memory_space<vmem>>, vector<32x32xf32>
    %cst_7 = arith.constant dense<0.000000e+00> : vector<16x32xf32>
    %5 = tpu.matmul %1, %4, %cst_7 {dimension_numbers = #tpu.dot_dimension_numbers<[1], [0], [0], [1], [0, 0, 1, 1], [], []>} : vector<16x32xf32>, vector<32x32xf32>, vector<16x32xf32> -> vector<16x32xf32>
    %6 = vector.shape_cast %5 : vector<16x32xf32> to vector<2x8x32xf32>
    %7 = vector.shape_cast %3 : vector<2x32xf32> to vector<2x1x32xf32>
    %8 = vector.broadcast %7 : vector<2x1x32xf32> to vector<2x8x32xf32>
    %9 = arith.addf %6, %8 : vector<2x8x32xf32>
    %c0_8 = arith.constant 0 : index
    %c0_9 = arith.constant 0 : index
    %10 = vector.load %arg4[%c0_8, %c0_9] : memref<1x32xf32, #tpu.memory_space<vmem>>, vector<1x32xf32>
    %11 = vector.shape_cast %10 : vector<1x32xf32> to vector<1x1x32xf32>
    %12 = vector.broadcast %11 : vector<1x1x32xf32> to vector<2x8x32xf32>
    %13 = arith.addf %9, %12 : vector<2x8x32xf32>
    %14 = math.tanh %13 : vector<2x8x32xf32>
    %c0_10 = arith.constant 0 : index
    %c0_11 = arith.constant 0 : index
    %15 = vector.load %arg5[%c0_10, %c0_11] : memref<1x32xf32, #tpu.memory_space<vmem>>, vector<1x32xf32>
    %16 = vector.shape_cast %15 : vector<1x32xf32> to vector<1x1x32xf32>
    %17 = vector.broadcast %16 : vector<1x1x32xf32> to vector<2x8x32xf32>
    %18 = arith.mulf %14, %17 : vector<2x8x32xf32>
    %cst_12 = arith.constant dense<0.000000e+00> : vector<2x8xf32>
    %19 = vector.multi_reduction <add>, %18, %cst_12 [2] : vector<2x8x32xf32> to vector<2x8xf32>
    %cst_13 = arith.constant dense<0xFF800000> : vector<2xf32>
    %20 = vector.multi_reduction <maximumf>, %19, %cst_13 [1] : vector<2x8xf32> to vector<2xf32>
    %21 = vector.shape_cast %20 : vector<2xf32> to vector<2x1xf32>
    %22 = vector.broadcast %21 : vector<2x1xf32> to vector<2x8xf32>
    %23 = arith.subf %19, %22 : vector<2x8xf32>
    %24 = math.exp %23 : vector<2x8xf32>
    %cst_14 = arith.constant dense<0.000000e+00> : vector<2xf32>
    %25 = vector.multi_reduction <add>, %24, %cst_14 [1] : vector<2x8xf32> to vector<2xf32>
    %26 = vector.shape_cast %25 : vector<2xf32> to vector<2x1xf32>
    %27 = tpu.reciprocal %26 {approx = true} : vector<2x1xf32> -> vector<2x1xf32>
    %28 = vector.broadcast %27 : vector<2x1xf32> to vector<2x8xf32>
    %29 = arith.mulf %24, %28 : vector<2x8xf32>
    %c0_15 = arith.constant 0 : index
    %c0_16 = arith.constant 0 : index
    %30 = vector.load %arg6[%c0_15, %c0_16] : memref<2x8xf32, #tpu.memory_space<vmem>>, vector<2x8xf32>
    %cst_17 = arith.constant 0.000000e+00 : f32
    %31 = vector.broadcast %cst_17 : f32 to vector<2x8xf32>
    %32 = arith.cmpf oeq, %30, %31 : vector<2x8xf32>
    %cst_18 = arith.constant -1.000000e+10 : f32
    %33 = vector.broadcast %cst_18 : f32 to vector<2x8xf32>
    %34 = arith.select %32, %33, %29 : vector<2x8xi1>, vector<2x8xf32>
    %c0_19 = arith.constant 0 : index
    %c0_20 = arith.constant 0 : index
    %35 = vector.load %arg8[%c0_19, %c0_20] : memref<2x8xf32, #tpu.memory_space<vmem>>, vector<2x8xf32>
    tpu.vector_store %arg8[%c0_19, %c0_20], %34 {strides = array<i32>} : memref<2x8xf32, #tpu.memory_space<vmem>>, vector<2x8xf32>,
    %36 = vector.shape_cast %1 : vector<16x32xf32> to vector<2x8x32xf32>
    %37 = vector.shape_cast %34 : vector<2x8xf32> to vector<2x1x8xf32>
    "tpu.trace_start"() <{level = 10 : i32, message = "bqs,bsh->bqh"}> : () -> ()
    %cst_21 = arith.constant dense<0.000000e+00> : vector<2x1x32xf32>
    %38 = tpu.matmul %37, %36, %cst_21 {dimension_numbers = #tpu.dot_dimension_numbers<[2], [1], [1], [2], [0, 0, 0, 1, 1, 2], [0], [0]>} : vector<2x1x8xf32>, vector<2x8x32xf32>, vector<2x1x32xf32> -> vector<2x1x32xf32>
    "tpu.trace_stop"() : () -> ()
    %39 = vector.shape_cast %38 : vector<2x1x32xf32> to vector<2x32xf32>
    %c0_22 = arith.constant 0 : index
    %c0_23 = arith.constant 0 : index
    %40 = vector.load %arg7[%c0_22, %c0_23] : memref<2x32xf32, #tpu.memory_space<vmem>>, vector<2x32xf32>
    tpu.vector_store %arg7[%c0_22, %c0_23], %39 {strides = array<i32>} : memref<2x32xf32, #tpu.memory_space<vmem>>, vector<2x32xf32>,
    return
  }
}

</mosaic_0001>

<llo_original>
// kernel: tpu_custom_call.1
$region0: #{tpu_custom_call.1}
  #allocation0 [shape = 'u32[]', space=smem, size = 0x4, offset = 0x4, fixed_abs, tag = 'smem constant byte address 0x4 - core index']
  #allocation1 [shape = 'u32[144,128]{1,0:T(1,128)}', space=vmem, size = 0x12000, scoped, tag = 'internal scratch']
  %s0 = inlined_call_operand.hbm [shape: f32[2,32], index: 0, kind: input, shape index: {}]
  %s1 = inlined_call_operand.hbm [shape: f32[16,32], index: 1, kind: input, shape index: {}]
  %s2 = inlined_call_operand.hbm [shape: f32[32,32], index: 2, kind: input, shape index: {}]
  %s3 = inlined_call_operand.hbm [shape: f32[32,32], index: 3, kind: input, shape index: {}]
  %s4 = inlined_call_operand.vmem [shape: f32[1,32], index: 4, kind: input, shape index: {}]
  %s5 = inlined_call_operand.vmem [shape: f32[1,32], index: 5, kind: input, shape index: {}]
  %s6 = inlined_call_operand.vmem [shape: f32[2,8], index: 6, kind: input, shape index: {}]
  %s7 = inlined_call_operand.hbm [shape: f32[2,32], index: 7, kind: output, shape index: {0}]
  %s8 = inlined_call_operand.hbm [shape: f32[2,8], index: 8, kind: output, shape index: {1}]
  %9 = xla_tuple %s7, %s8
  %s10 = sld [smem:[#allocation0]]
  $region62: #{tpu_custom_call.1} parent=0
    _
  %s12 = ssub.s32 1, %s10
  %s13 = scalar_select 0, %s12, %s10
  $region1: #{tpu_custom_call.1} parent=0
    #allocation2 [shape = 'u8[1024]{0}', space=vmem, size = 0x400, scoped, tag = 'input window, operand 0, single buffered']
    #allocation3 [shape = 's32[1]{0}', space=sflag, size = 0x4, scoped, tag = 'scoped memory for tpu_custom_call.1']
    #allocation4 [shape = 's32[1]{0}', space=sflag, size = 0x4, scoped, tag = 'scoped memory for tpu_custom_call.1']
    #allocation5 [shape = 'u8[8192]{0}', space=vmem, size = 0x2000, scoped, tag = 'input window, operand 1, single buffered']
    #allocation6 [shape = 's32[1]{0}', space=sflag, size = 0x4, scoped, tag = 'scoped memory for tpu_custom_call.1']
    #allocation7 [shape = 'u8[16384]{0}', space=vmem, size = 0x4000, scoped, tag = 'input window, operand 2, single buffered']
    #allocation8 [shape = 'u8[16384]{0}', space=vmem, size = 0x4000, scoped, tag = 'input window, operand 3, single buffered']
    #allocation9 [shape = 's32[1]{0}', space=sflag, size = 0x4, scoped, tag = 'scoped memory for tpu_custom_call.1']
    #allocation10 [shape = 'u8[1024]{0}', space=vmem, size = 0x400, scoped, tag = 'output window, operand 0, single buffered']
    #allocation11 [shape = 'u8[1024]{0}', space=vmem, size = 0x400, scoped, tag = 'output window, operand 1, single buffered']
    #allocation12 [shape = 's32[1]{0}', space=sflag, size = 0x4, scoped, tag = 'scoped memory for tpu_custom_call.1']
    %14 = vsyncpa [#allocation3], 0
    %15 = vsyncpa [#allocation6], 0
    %16 = vsyncpa [#allocation9], 0
    %17 = vsyncpa [#allocation4], 0
    %18 = vsyncpa [#allocation12], 0
    // Predicated region
    $region2: #{tpu_custom_call.1} parent=1 // pred_check
      _
    $region3: #{tpu_custom_call.1} parent=1 // pred_check_branch
      %20 = sbr.rel (0) target = $region5
    $region4: #{tpu_custom_call.1} parent=1 // pred_region
      %s22 = ssub.s32 32, 32
      %23 = vsyncadd [#allocation3], %s22
      %s25 = sshll.u32 [#allocation2], 4
      %s26 = int_to_ptr.vmem [resolvable:$true] %s25
      %28 = dma.hbm_to_vmem [thread:$0]  %s0, 32, %s26, [#allocation3]
    $region5: #{tpu_custom_call.1} parent=1 // pred_fallthru
      _
    // Predicated region
    $region6: #{tpu_custom_call.1} parent=1 // pred_check
      _
    $region7: #{tpu_custom_call.1} parent=1 // pred_check_branch
      %30 = sbr.rel (0) target = $region9
    $region8: #{tpu_custom_call.1} parent=1 // pred_region
      %s32 = ssub.s32 256, 256
      %33 = vsyncadd [#allocation6], %s32
      %s34 = sshll.u32 [#allocation5], 4
      %s35 = int_to_ptr.vmem [resolvable:$true] %s34
      %40 = dma.hbm_to_vmem [thread:$0]  %s1, 256, %s35, [#allocation6], 128, 128, 8
    $region9: #{tpu_custom_call.1} parent=1 // pred_fallthru
      _
    // Predicated region
    $region10: #{tpu_custom_call.1} parent=1 // pred_check
      _
    $region11: #{tpu_custom_call.1} parent=1 // pred_check_branch
      %42 = sbr.rel (0) target = $region13
    $region12: #{tpu_custom_call.1} parent=1 // pred_region
      %s44 = ssub.s32 512, 512
      %45 = vsyncadd [#allocation6], %s44
      %s46 = sshll.u32 [#allocation7], 4
      %s47 = int_to_ptr.vmem [resolvable:$true] %s46
      %52 = dma.hbm_to_vmem [thread:$0]  %s2, 512, %s47, [#allocation6], 128, 128, 8
    $region13: #{tpu_custom_call.1} parent=1 // pred_fallthru
      _
    // Predicated region
    $region14: #{tpu_custom_call.1} parent=1 // pred_check
      _
    $region15: #{tpu_custom_call.1} parent=1 // pred_check_branch
      %54 = sbr.rel (0) target = $region17
    $region16: #{tpu_custom_call.1} parent=1 // pred_region
      %s56 = ssub.s32 512, 512
      %57 = vsyncadd [#allocation9], %s56
      %s58 = sshll.u32 [#allocation8], 4
      %s59 = int_to_ptr.vmem [resolvable:$true] %s58
      %64 = dma.hbm_to_vmem [thread:$0]  %s3, 512, %s59, [#allocation9], 128, 128, 8
    $region17: #{tpu_custom_call.1} parent=1 // pred_fallthru
      _
    // Predicated region
    $region18: #{tpu_custom_call.1} parent=1 // pred_check
      _
    $region19: #{tpu_custom_call.1} parent=1 // pred_check_branch
      %66 = sbr.rel (0) target = $region21
    $region20: #{tpu_custom_call.1} parent=1 // pred_region
      _
    $region21: #{tpu_custom_call.1} parent=1 // pred_fallthru
      _
    // Predicated region
    $region22: #{tpu_custom_call.1} parent=1 // pred_check
      _
    $region23: #{tpu_custom_call.1} parent=1 // pred_check_branch
      %68 = sbr.rel (0) target = $region25
    $region24: #{tpu_custom_call.1} parent=1 // pred_region
      _
    $region25: #{tpu_custom_call.1} parent=1 // pred_fallthru
      _
    // Predicated region
    $region26: #{tpu_custom_call.1} parent=1 // pred_check
      _
    $region27: #{tpu_custom_call.1} parent=1 // pred_check_branch
      %70 = sbr.rel (0) target = $region29
    $region28: #{tpu_custom_call.1} parent=1 // pred_region
      _
    $region29: #{tpu_custom_call.1} parent=1 // pred_fallthru
      _
    // Predicated region
    $region30: #{tpu_custom_call.1} parent=1 // pred_check
      _
    $region31: #{tpu_custom_call.1} parent=1 // pred_check_branch
      %72 = sbr.rel (0) target = $region33
    $region32: #{tpu_custom_call.1} parent=1 // pred_region
      %73 = dma.done [#allocation3], 32
    $region33: #{tpu_custom_call.1} parent=1 // pred_fallthru
      _
    // Predicated region
    $region34: #{tpu_custom_call.1} parent=1 // pred_check
      _
    $region35: #{tpu_custom_call.1} parent=1 // pred_check_branch
      %75 = sbr.rel (0) target = $region37
    $region36: #{tpu_custom_call.1} parent=1 // pred_region
      %76 = dma.done [#allocation6], 256
    $region37: #{tpu_custom_call.1} parent=1 // pred_fallthru
      _
    // Predicated region
    $region38: #{tpu_custom_call.1} parent=1 // pred_check
      _
    $region39: #{tpu_custom_call.1} parent=1 // pred_check_branch
      %78 = sbr.rel (0) target = $region41
    $region40: #{tpu_custom_call.1} parent=1 // pred_region
      %79 = dma.done [#allocation6], 512
    $region41: #{tpu_custom_call.1} parent=1 // pred_fallthru
      _
    // Predicated region
    $region42: #{tpu_custom_call.1} parent=1 // pred_check
      _
    $region43: #{tpu_custom_call.1} parent=1 // pred_check_branch
      %81 = sbr.rel (0) target = $region45
    $region44: #{tpu_custom_call.1} parent=1 // pred_region
      %82 = dma.done [#allocation9], 512
    $region45: #{tpu_custom_call.1} parent=1 // pred_fallthru
      _
    %v83 = vld [vmem:[#allocation2] sm:$0x3]
    %v84 = vld [vmem:[#allocation5] sm:$0xff]
    %v85 = vld [vmem:[#allocation5 + $0x8] sm:$0xff]
    %v86 = vld [vmem:[#allocation7] sm:$0xff]
    %v87 = vld [vmem:[#allocation7 + $0x8] sm:$0xff]
    %v88 = vld [vmem:[#allocation7 + $0x10] sm:$0xff]
    %v89 = vld [vmem:[#allocation7 + $0x18] sm:$0xff]
    %vm90 = vcmask 261120
    %v92 = vsel %vm90, %v83, 0
    %94 = vmatprep.subr.mxu0 0.0
    %95 = vmatpush1.msra.mxu0 %v86
    %96 = vmatprep.subr.mxu0 0.0
    %97 = vmatpush1.msra.mxu0 %v87
    %98 = vmatprep.subr.mxu0 0.0
    %99 = vmatpush1.msra.mxu0 %v88
    %100 = vmatprep.subr.mxu0 0.0
    %101 = vmatpush1.msra.mxu0 %v89
    %102 = vmatprep.subr.mxu0 0.0
    %103 = vmatpush1.msra.mxu0 0.0
    %104 = vmatprep.subr.mxu0 0.0
    %105 = vmatpush1.msra.mxu0 0.0
    %106 = vmatprep.subr.mxu0 0.0
    %107 = vmatpush1.msra.mxu0 0.0
    %108 = vmatprep.subr.mxu0 0.0
    %109 = vmatpush1.msra.mxu0 0.0
    %110 = vmatprep.subr.mxu0 0.0
    %111 = vmatpush1.msra.mxu0 0.0
    %112 = vmatprep.subr.mxu0 0.0
    %113 = vmatpush1.msra.mxu0 0.0
    %114 = vmatprep.subr.mxu0 0.0
    %115 = vmatpush1.msra.mxu0 0.0
    %116 = vmatprep.subr.mxu0 0.0
    %117 = vmatpush1.msra.mxu0 0.0
    %118 = vmatprep.subr.mxu0 0.0
    %119 = vmatpush1.msra.mxu0 0.0
    %120 = vmatprep.subr.mxu0 0.0
    %121 = vmatpush1.msra.mxu0 0.0
    %122 = vmatprep.subr.mxu0 0.0
    %123 = vmatpush1.msra.mxu0 0.0
    %124 = vmatprep.subr.mxu0 0.0
    %125 = vmatpush1.msra.mxu0 0.0
    %126 = vmatprep.subr.mxu0 0.0
    %127 = vmatpush1.msra.mxu0 0.0
    %128 = vmatprep.subr.mxu0 0.0
    %129 = vmatpush1.msra.mxu0 0.0
    %130 = vmatprep.subr.mxu0 0.0
    %131 = vmatpush1.msra.mxu0 0.0
    %132 = vmatprep.subr.mxu0 0.0
    %133 = vmatpush1.msra.mxu0 0.0
    %134 = vmatprep.subr.mxu0 0.0
    %135 = vmatpush1.msra.mxu0 0.0
    %136 = vmatprep.subr.mxu0 0.0
    %137 = vmatpush1.msra.mxu0 0.0
    %138 = vmatprep.subr.mxu0 0.0
    %139 = vmatpush1.msra.mxu0 0.0
    %140 = vmatprep.subr.mxu0 0.0
    %141 = vmatpush1.msra.mxu0 0.0
    %142 = vmatprep.subr.mxu0 0.0
    %143 = vmatpush1.msra.mxu0 0.0
    %144 = vmatprep.subr.mxu0 0.0
    %145 = vmatpush1.msra.mxu0 0.0
    %146 = vmatprep.subr.mxu0 0.0
    %147 = vmatpush1.msra.mxu0 0.0
    %148 = vmatprep.subr.mxu0 0.0
    %149 = vmatpush1.msra.mxu0 0.0
    %150 = vmatprep.subr.mxu0 0.0
    %151 = vmatpush1.msra.mxu0 0.0
    %152 = vmatprep.subr.mxu0 0.0
    %153 = vmatpush1.msra.mxu0 0.0
    %154 = vmatprep.subr.mxu0 0.0
    %155 = vmatpush1.msra.mxu0 0.0
    %156 = vmatprep.subr.mxu0 0.0
    %157 = vmatpush1.msra.mxu0 0.0
    %158 = vmatprep.mubr.f32.mxu0 0.0
    %159 = vmatmul.mubr.f32.gmra.mrb[0].mxu0 %v92
    %v160 = vpop.f32.mrb[0].mxu0
    %v161 = vadd.f32 0.0, %v160
    %v162 = vpop.f32.mrb[0].mxu0
    %163 = vdwg.mxu0
    %v164 = vld [vmem:[#allocation8] sm:$0xff]
    %v165 = vld [vmem:[#allocation8 + $0x8] sm:$0xff]
    %v166 = vld [vmem:[#allocation8 + $0x10] sm:$0xff]
    %v167 = vld [vmem:[#allocation8 + $0x18] sm:$0xff]
    %v169 = vsel %vm90, %v84, 0
    %v172 = vsel %vm90, %v85, 0
    %174 = vmatprep.subr.mxu0 0.0
    %175 = vmatpush1.msra.mxu0 %v164
    %176 = vmatprep.subr.mxu0 0.0
    %177 = vmatpush1.msra.mxu0 %v165
    %178 = vmatprep.subr.mxu0 0.0
    %179 = vmatpush1.msra.mxu0 %v166
    %180 = vmatprep.subr.mxu0 0.0
    %181 = vmatpush1.msra.mxu0 %v167
    %182 = vmatprep.subr.mxu0 0.0
    %183 = vmatpush1.msra.mxu0 0.0
    %184 = vmatprep.subr.mxu0 0.0
    %185 = vmatpush1.msra.mxu0 0.0
    %186 = vmatprep.subr.mxu0 0.0
    %187 = vmatpush1.msra.mxu0 0.0
    %188 = vmatprep.subr.mxu0 0.0
    %189 = vmatpush1.msra.mxu0 0.0
    %190 = vmatprep.subr.mxu0 0.0
    %191 = vmatpush1.msra.mxu0 0.0
    %192 = vmatprep.subr.mxu0 0.0
    %193 = vmatpush1.msra.mxu0 0.0
    %194 = vmatprep.subr.mxu0 0.0
    %195 = vmatpush1.msra.mxu0 0.0
    %196 = vmatprep.subr.mxu0 0.0
    %197 = vmatpush1.msra.mxu0 0.0
    %198 = vmatprep.subr.mxu0 0.0
    %199 = vmatpush1.msra.mxu0 0.0
    %200 = vmatprep.subr.mxu0 0.0
    %201 = vmatpush1.msra.mxu0 0.0
    %202 = vmatprep.subr.mxu0 0.0
    %203 = vmatpush1.msra.mxu0 0.0
    %204 = vmatprep.subr.mxu0 0.0
    %205 = vmatpush1.msra.mxu0 0.0
    %206 = vmatprep.subr.mxu0 0.0
    %207 = vmatpush1.msra.mxu0 0.0
    %208 = vmatprep.subr.mxu0 0.0
    %209 = vmatpush1.msra.mxu0 0.0
    %210 = vmatprep.subr.mxu0 0.0
    %211 = vmatpush1.msra.mxu0 0.0
    %212 = vmatprep.subr.mxu0 0.0
    %213 = vmatpush1.msra.mxu0 0.0
    %214 = vmatprep.subr.mxu0 0.0
    %215 = vmatpush1.msra.mxu0 0.0
    %216 = vmatprep.subr.mxu0 0.0
    %217 = vmatpush1.msra.mxu0 0.0
    %218 = vmatprep.subr.mxu0 0.0
    %219 = vmatpush1.msra.mxu0 0.0
    %220 = vmatprep.subr.mxu0 0.0
    %221 = vmatpush1.msra.mxu0 0.0
    %222 = vmatprep.subr.mxu0 0.0
    %223 = vmatpush1.msra.mxu0 0.0
    %224 = vmatprep.subr.mxu0 0.0
    %225 = vmatpush1.msra.mxu0 0.0
    %226 = vmatprep.subr.mxu0 0.0
    %227 = vmatpush1.msra.mxu0 0.0
    %228 = vmatprep.subr.mxu0 0.0
    %229 = vmatpush1.msra.mxu0 0.0
    %230 = vmatprep.subr.mxu0 0.0
    %231 = vmatpush1.msra.mxu0 0.0
    %232 = vmatprep.subr.mxu0 0.0
    %233 = vmatpush1.msra.mxu0 0.0
    %234 = vmatprep.subr.mxu0 0.0
    %235 = vmatpush1.msra.mxu0 0.0
    %236 = vmatprep.subr.mxu0 0.0
    %237 = vmatpush1.msra.mxu0 0.0
    %238 = vmatprep.mubr.f32.mxu0 0.0
    %239 = vmatmul.mubr.f32.gmra.mrb[0].mxu0 %v169
    %v240 = vpop.f32.mrb[0].mxu0
    %v241 = vadd.f32 0.0, %v240
    %v242 = vpop.f32.mrb[0].mxu0
    %243 = vmatprep.mubr.f32.mxu0 0.0
    %244 = vmatmul.mubr.f32.gmra.mrb[0].mxu0 %v172
    %v245 = vpop.f32.mrb[0].mxu0
    %v246 = vadd.f32 0.0, %v245
    %v247 = vpop.f32.mrb[0].mxu0
    %248 = vdwg.mxu0
    %v251 = vunpack.c.l.s4 1966171168
    %v252 = vunpack.c.0.s8 %v251
    %v253 = vlaneseq
    %v254 = vshrl.u32 %v253, 7
    %v255 = vsub.s32 %v252, %v254
    %v256 = vrot.slane %v161, %v255
    %v257 = vcombine.high %v256, %v256
    %v259 = vunpack.c.l.s4 1966171168
    %v260 = vunpack.c.0.s8 %v259
    %v261 = vlaneseq
    %v262 = vshrl.u32 %v261, 7
    %v263 = vsub.s32 %v260, %v262
    %v264 = vrot.slane %v256, %v263
    %v266 = vunpack.c.l.s4 1966171168
    %v267 = vunpack.c.0.s8 %v266
    %v268 = vlaneseq
    %v269 = vshrl.u32 %v268, 7
    %v270 = vsub.s32 %v267, %v269
    %v271 = vrot.slane %v257, %v270
    %v272 = vlaneseq
    %v273 = vshrl.u32 %v272, 7
    %v274 = vsub.s32 0, %v273
    %v275 = vrot.slane %v264, %v274
    %v276 = vlaneseq
    %v277 = vshrl.u32 %v276, 7
    %v278 = vsub.s32 0, %v277
    %v279 = vrot.slane %v271, %v278
    %v282 = vadd.f32 %v241, %v275
    %v283 = vadd.f32 %v246, %v279
    %v284 = vld [vmem:[%s4] sm:$0x1]
    %v286 = vlaneseq
    %v287 = vshrl.u32 %v286, 7
    %v288 = vsub.s32 0, %v287
    %v289 = vrot.slane %v284, %v288
    %v291 = vadd.f32 %v282, %v289
    %v292 = vadd.f32 %v283, %v289
    %v293 = vtanh.pop %v291
    %v294 = vtanh.pop %v292
    %v295 = vld [vmem:[%s5] sm:$0x1]
    %v297 = vlaneseq
    %v298 = vshrl.u32 %v297, 7
    %v299 = vsub.s32 0, %v298
    %v300 = vrot.slane %v295, %v299
    %v302 = vmul.f32 %v293, %v300
    %v303 = vmul.f32 %v294, %v300
    %v304 = vsel %vm90, %v302, 0.0
    %305 = vadd.xlane.f32.xlu0 %v304
    %v306 = vpop.xlane.xlu0 %305
    %v307 = vsel %vm90, %v303, 0.0
    %308 = vadd.xlane.f32.xlu0 %v307
    %v309 = vpop.xlane.xlu0 %308
    %v312 = vlaneseq
    %v313 = vand.u32 %v312, 127
    %v314 = vlaneseq
    %v315 = vshrl.u32 %v314, 7
    %v316 = vsub.s32 %v313, %v315
    %v317 = vrot.slane %v306, %v316
    %v318 = vlaneseq
    %v319 = vshrl.u32 %v318, 7
    %v320 = vsub.s32 %v313, %v319
    %v321 = vrot.slane %v309, %v320
    %vm322 = vcmask 1041409
    %v323 = vsel %vm322, %v321, %v317
    %vm325 = vcmask 58368
    %v326 = vsel %vm325, %v323, -inf
    %327 = vmax.xlane.f32.xlu0 %v326
    %v328 = vpop.xlane.xlu0 %327
    %v330 = vlaneseq
    %v331 = vshrl.u32 %v330, 7
    %v332 = vsub.s32 0, %v331
    %v333 = vrot.slane %v328, %v332
    %v334 = vlaneseq
    %v335 = vshrl.u32 %v334, 7
    %v336 = vsub.s32 1, %v335
    %v337 = vrot.slane %v328, %v336
    %v340 = vsub.f32 %v306, %v333
    %v341 = vsub.f32 %v309, %v337
    %v342 = vmul.f32 %v340, 1.442695
    %v343 = vpow.pop %v342
    %v344 = vmul.f32 %v341, 1.442695
    %v345 = vpow.pop %v344
    %348 = vset.pattern.permute.xlu0 0
    %349 = vperm.xlu0 %348, %v343
    %v350 = vpop.permute.xlu0 %349
    %351 = vset.pattern.permute.xlu0 0
    %352 = vperm.xlu0 %351, %v345
    %v353 = vpop.permute.xlu0 %352
    %v354 = vlaneseq
    %v355 = vshrl.u32 %v354, 7
    %v356 = vsub.s32 %v313, %v355
    %v357 = vrot.slane %v350, %v356
    %v358 = vlaneseq
    %v359 = vshrl.u32 %v358, 7
    %v360 = vsub.s32 %v313, %v359
    %v361 = vrot.slane %v353, %v360
    %v362 = vsel %vm322, %v361, %v357
    %v364 = vsel %vm325, %v362, 0.0
    %365 = vadd.xlane.f32.xlu0 %v364
    %v366 = vpop.xlane.xlu0 %365
    %v367 = vrcp.pop %v366
    %v369 = vlaneseq
    %v370 = vshrl.u32 %v369, 7
    %v371 = vsub.s32 0, %v370
    %v372 = vrot.slane %v367, %v371
    %v373 = vlaneseq
    %v374 = vshrl.u32 %v373, 7
    %v375 = vsub.s32 1, %v374
    %v376 = vrot.slane %v367, %v375
    %v379 = vmul.f32 %v343, %v372
    %v380 = vmul.f32 %v345, %v376
    %v381 = vld [vmem:[%s6] sm:$0x3]
    %vm382 = vcmp.eq.f32.partialorder %v381, 0.0
    %385 = vset.pattern.permute.xlu0 0
    %386 = vperm.xlu0 %385, %v379
    %v387 = vpop.permute.xlu0 %386
    %388 = vset.pattern.permute.xlu0 0
    %389 = vperm.xlu0 %388, %v380
    %v390 = vpop.permute.xlu0 %389
    %v391 = vlaneseq
    %v392 = vshrl.u32 %v391, 7
    %v393 = vsub.s32 %v313, %v392
    %v394 = vrot.slane %v387, %v393
    %v395 = vlaneseq
    %v396 = vshrl.u32 %v395, 7
    %v397 = vsub.s32 %v313, %v396
    %v398 = vrot.slane %v390, %v397
    %v399 = vsel %vm322, %v398, %v394
    %v401 = vsel %vm382, -1e+10, %v399
    %402 = vst.msk [vmem:[#allocation11] sm:$0x3] %vm325, %v401
    %v405 = vunpack.c.l.s4 1966171168
    %v406 = vunpack.c.0.s8 %v405
    %v407 = vlaneseq
    %v408 = vshrl.u32 %v407, 7
    %v409 = vsub.s32 %v406, %v408
    %v410 = vrot.slane %v401, %v409
    %v411 = vcombine.high %v410, %v410
    %v413 = vunpack.c.l.s4 1966171168
    %v414 = vunpack.c.0.s8 %v413
    %v415 = vlaneseq
    %v416 = vshrl.u32 %v415, 7
    %v417 = vsub.s32 %v414, %v416
    %v418 = vrot.slane %v410, %v417
    %v420 = vunpack.c.l.s4 1966171168
    %v421 = vunpack.c.0.s8 %v420
    %v422 = vlaneseq
    %v423 = vshrl.u32 %v422, 7
    %v424 = vsub.s32 %v421, %v423
    %v425 = vrot.slane %v411, %v424
    %vm426 = vcmask 64512
    %v427 = vsel %vm426, %v418, 0
    %429 = vmatprep.subr.mxu0 0.0
    %430 = vmatpush1.msra.mxu0 %v84
    %431 = vmatprep.subr.mxu0 0.0
    %432 = vmatpush1.msra.mxu0 0.0
    %433 = vmatprep.subr.mxu0 0.0
    %434 = vmatpush1.msra.mxu0 0.0
    %435 = vmatprep.subr.mxu0 0.0
    %436 = vmatpush1.msra.mxu0 0.0
    %437 = vmatprep.subr.mxu0 0.0
    %438 = vmatpush1.msra.mxu0 0.0
    %439 = vmatprep.subr.mxu0 0.0
    %440 = vmatpush1.msra.mxu0 0.0
    %441 = vmatprep.subr.mxu0 0.0
    %442 = vmatpush1.msra.mxu0 0.0
    %443 = vmatprep.subr.mxu0 0.0
    %444 = vmatpush1.msra.mxu0 0.0
    %445 = vmatprep.subr.mxu0 0.0
    %446 = vmatpush1.msra.mxu0 0.0
    %447 = vmatprep.subr.mxu0 0.0
    %448 = vmatpush1.msra.mxu0 0.0
    %449 = vmatprep.subr.mxu0 0.0
    %450 = vmatpush1.msra.mxu0 0.0
    %451 = vmatprep.subr.mxu0 0.0
    %452 = vmatpush1.msra.mxu0 0.0
    %453 = vmatprep.subr.mxu0 0.0
    %454 = vmatpush1.msra.mxu0 0.0
    %455 = vmatprep.subr.mxu0 0.0
    %456 = vmatpush1.msra.mxu0 0.0
    %457 = vmatprep.subr.mxu0 0.0
    %458 = vmatpush1.msra.mxu0 0.0
    %459 = vmatprep.subr.mxu0 0.0
    %460 = vmatpush1.msra.mxu0 0.0
    %461 = vmatprep.subr.mxu0 0.0
    %462 = vmatpush1.msra.mxu0 0.0
    %463 = vmatprep.subr.mxu0 0.0
    %464 = vmatpush1.msra.mxu0 0.0
    %465 = vmatprep.subr.mxu0 0.0
    %466 = vmatpush1.msra.mxu0 0.0
    %467 = vmatprep.subr.mxu0 0.0
    %468 = vmatpush1.msra.mxu0 0.0
    %469 = vmatprep.subr.mxu0 0.0
    %470 = vmatpush1.msra.mxu0 0.0
    %471 = vmatprep.subr.mxu0 0.0
    %472 = vmatpush1.msra.mxu0 0.0
    %473 = vmatprep.subr.mxu0 0.0
    %474 = vmatpush1.msra.mxu0 0.0
    %475 = vmatprep.subr.mxu0 0.0
    %476 = vmatpush1.msra.mxu0 0.0
    %477 = vmatprep.subr.mxu0 0.0
    %478 = vmatpush1.msra.mxu0 0.0
    %479 = vmatprep.subr.mxu0 0.0
    %480 = vmatpush1.msra.mxu0 0.0
    %481 = vmatprep.subr.mxu0 0.0
    %482 = vmatpush1.msra.mxu0 0.0
    %483 = vmatprep.subr.mxu0 0.0
    %484 = vmatpush1.msra.mxu0 0.0
    %485 = vmatprep.subr.mxu0 0.0
    %486 = vmatpush1.msra.mxu0 0.0
    %487 = vmatprep.subr.mxu0 0.0
    %488 = vmatpush1.msra.mxu0 0.0
    %489 = vmatprep.subr.mxu0 0.0
    %490 = vmatpush1.msra.mxu0 0.0
    %491 = vmatprep.subr.mxu0 0.0
    %492 = vmatpush1.msra.mxu0 0.0
    %493 = vmatprep.mubr.f32.mxu0 0.0
    %494 = vmatmul.mubr.f32.gmra.mrb[0].mxu0 %v427
    %v495 = vpop.f32.mrb[0].mxu0
    %v496 = vadd.f32 0.0, %v495
    %v497 = vpop.f32.mrb[0].mxu0
    %498 = vdwg.mxu0
    %v499 = vsel %vm426, %v425, 0
    %501 = vmatprep.subr.mxu0 0.0
    %502 = vmatpush1.msra.mxu0 %v85
    %503 = vmatprep.subr.mxu0 0.0
    %504 = vmatpush1.msra.mxu0 0.0
    %505 = vmatprep.subr.mxu0 0.0
    %506 = vmatpush1.msra.mxu0 0.0
    %507 = vmatprep.subr.mxu0 0.0
    %508 = vmatpush1.msra.mxu0 0.0
    %509 = vmatprep.subr.mxu0 0.0
    %510 = vmatpush1.msra.mxu0 0.0
    %511 = vmatprep.subr.mxu0 0.0
    %512 = vmatpush1.msra.mxu0 0.0
    %513 = vmatprep.subr.mxu0 0.0
    %514 = vmatpush1.msra.mxu0 0.0
    %515 = vmatprep.subr.mxu0 0.0
    %516 = vmatpush1.msra.mxu0 0.0
    %517 = vmatprep.subr.mxu0 0.0
    %518 = vmatpush1.msra.mxu0 0.0
    %519 = vmatprep.subr.mxu0 0.0
    %520 = vmatpush1.msra.mxu0 0.0
    %521 = vmatprep.subr.mxu0 0.0
    %522 = vmatpush1.msra.mxu0 0.0
    %523 = vmatprep.subr.mxu0 0.0
    %524 = vmatpush1.msra.mxu0 0.0
    %525 = vmatprep.subr.mxu0 0.0
    %526 = vmatpush1.msra.mxu0 0.0
    %527 = vmatprep.subr.mxu0 0.0
    %528 = vmatpush1.msra.mxu0 0.0
    %529 = vmatprep.subr.mxu0 0.0
    %530 = vmatpush1.msra.mxu0 0.0
    %531 = vmatprep.subr.mxu0 0.0
    %532 = vmatpush1.msra.mxu0 0.0
    %533 = vmatprep.subr.mxu0 0.0
    %534 = vmatpush1.msra.mxu0 0.0
    %535 = vmatprep.subr.mxu0 0.0
    %536 = vmatpush1.msra.mxu0 0.0
    %537 = vmatprep.subr.mxu0 0.0
    %538 = vmatpush1.msra.mxu0 0.0
    %539 = vmatprep.subr.mxu0 0.0
    %540 = vmatpush1.msra.mxu0 0.0
    %541 = vmatprep.subr.mxu0 0.0
    %542 = vmatpush1.msra.mxu0 0.0
    %543 = vmatprep.subr.mxu0 0.0
    %544 = vmatpush1.msra.mxu0 0.0
    %545 = vmatprep.subr.mxu0 0.0
    %546 = vmatpush1.msra.mxu0 0.0
    %547 = vmatprep.subr.mxu0 0.0
    %548 = vmatpush1.msra.mxu0 0.0
    %549 = vmatprep.subr.mxu0 0.0
    %550 = vmatpush1.msra.mxu0 0.0
    %551 = vmatprep.subr.mxu0 0.0
    %552 = vmatpush1.msra.mxu0 0.0
    %553 = vmatprep.subr.mxu0 0.0
    %554 = vmatpush1.msra.mxu0 0.0
    %555 = vmatprep.subr.mxu0 0.0
    %556 = vmatpush1.msra.mxu0 0.0
    %557 = vmatprep.subr.mxu0 0.0
    %558 = vmatpush1.msra.mxu0 0.0
    %559 = vmatprep.subr.mxu0 0.0
    %560 = vmatpush1.msra.mxu0 0.0
    %561 = vmatprep.subr.mxu0 0.0
    %562 = vmatpush1.msra.mxu0 0.0
    %563 = vmatprep.subr.mxu0 0.0
    %564 = vmatpush1.msra.mxu0 0.0
    %565 = vmatprep.mubr.f32.mxu0 0.0
    %566 = vmatmul.mubr.f32.gmra.mrb[0].mxu0 %v499
    %v567 = vpop.f32.mrb[0].mxu0
    %v568 = vadd.f32 0.0, %v567
    %v569 = vpop.f32.mrb[0].mxu0
    %570 = vdwg.mxu0
    %v573 = vrot.slane %v568, 7
    %v574 = vsel %vm322, %v573, %v496
    %vm576 = vcmask 254976
    %577 = vst.msk [vmem:[#allocation10] sm:$0x3] %vm576, %v574
    // Predicated region
    $region46: #{tpu_custom_call.1} parent=1 // pred_check
      _
    $region47: #{tpu_custom_call.1} parent=1 // pred_check_branch
      %579 = sbr.rel (0) target = $region49
    $region48: #{tpu_custom_call.1} parent=1 // pred_region
      %s581 = ssub.s32 32, 32
      %582 = vsyncadd [#allocation4], %s581
      %s584 = sshll.u32 [#allocation10], 4
      %s585 = int_to_ptr.vmem [resolvable:$true] %s584
      %587 = dma.vmem_to_hbm [thread:$0]  %s585, 32, %s7, [#allocation4]
    $region49: #{tpu_custom_call.1} parent=1 // pred_fallthru
      _
    // Predicated region
    $region50: #{tpu_custom_call.1} parent=1 // pred_check
      _
    $region51: #{tpu_custom_call.1} parent=1 // pred_check_branch
      %589 = sbr.rel (0) target = $region53
    $region52: #{tpu_custom_call.1} parent=1 // pred_region
      %s591 = ssub.s32 32, 32
      %592 = vsyncadd [#allocation12], %s591
      %s594 = sshll.u32 [#allocation11], 4
      %s595 = int_to_ptr.vmem [resolvable:$true] %s594
      %597 = dma.vmem_to_hbm [thread:$0]  %s595, 32, %s8, [#allocation12]
    $region53: #{tpu_custom_call.1} parent=1 // pred_fallthru
      _
    // Predicated region
    $region54: #{tpu_custom_call.1} parent=1 // pred_check
      _
    $region55: #{tpu_custom_call.1} parent=1 // pred_check_branch
      %599 = sbr.rel (0) target = $region57
    $region56: #{tpu_custom_call.1} parent=1 // pred_region
      %600 = dma.done [#allocation4], 32
    $region57: #{tpu_custom_call.1} parent=1 // pred_fallthru
      _
    // Predicated region
    $region58: #{tpu_custom_call.1} parent=1 // pred_check
      _
    $region59: #{tpu_custom_call.1} parent=1 // pred_check_branch
      %602 = sbr.rel (0) target = $region61
    $region60: #{tpu_custom_call.1} parent=1 // pred_region
      %603 = dma.done [#allocation12], 32
    $region61: #{tpu_custom_call.1} parent=1 // pred_fallthru
      _
    %604 = vsyncpa [#allocation3], 1
    %605 = vsyncpa [#allocation6], 1
    %606 = vsyncpa [#allocation9], 1
    %607 = vsyncpa [#allocation4], 1
    %608 = vsyncpa [#allocation12], 1

</llo_original>
